<compile_context>
chip_gen: v7x
topology: tpu7x:2x2x1
jax: 0.10.0
libtpu: 0.0.40
codegen_flags: <defaults>
</compile_context>

<pallas_src>
import jax
import jax.numpy as jnp
from jax.experimental import pallas as pl
from jax.experimental.pallas import tpu as pltpu


def _mlp_kernel(xt_ref, w1_ref, w2_ref, o_ref):
    # xt_ref : (F+1, TN)   transposed, bias-augmented input tile (batch on lanes)
    # w1_ref : (H+1, F+1)  [W1^T | b1] plus a [0..0 | 1] row that yields a ones row
    # w2_ref : (O,   H+1)  [W2^T | b2]
    # o_ref  : (O,   TN)   y^T tile (batch on lanes -> lane-dense, unmasked store)
    h = jnp.dot(w1_ref[...], xt_ref[...], preferred_element_type=jnp.float32)
    h = jnp.maximum(h, 0.0)  # F.relu; carried ones row stays exactly 1.0 (relu(1)=1)
    y = jnp.dot(w2_ref[...], h, preferred_element_type=jnp.float32)
    o_ref[...] = y.astype(o_ref.dtype)


# Gridless single-step path is used while total VMEM residency fits this budget
# (safe on v5e/v6e 128 MiB and v7x 64 MiB physical VMEM, with 40 MiB scoped limit).
_GRIDLESS_VMEM_BUDGET = 24 * 1024 * 1024
_GRIDLESS_VMEM_LIMIT = 40 * 1024 * 1024

# Batch-lane tile for the gridded (truly huge batch) fallback path.  Large enough
# that per-step HBM bytes (~0.7 MB) dominate the ~0.35 us per-step overhead.
_TILE_N = 32768


def _round_up(v, m):
    return ((v + m - 1) // m) * m


def net_forward(x, w1, b1, w2, b2, *,
                gridless_budget_bytes=_GRIDLESS_VMEM_BUDGET,
                tile_n=_TILE_N):
    """x: (N, n_feature) f32.  w1: (n_feature, n_hidden), b1: (n_hidden,),
    w2: (n_hidden, n_output), b2: (n_output,).  Returns (N, n_output) f32."""
    x = x.astype(jnp.float32)
    n, f = x.shape
    h = w1.shape[1]
    o = w2.shape[1]

    # VMEM-budget-based path selection: whole-array residency is
    # (f+1)*n_pad*4 (input) + o*n_pad*4 (output) + tiny weights.
    n_pad128 = _round_up(n, 128)
    gridless = (f + 1 + o) * n_pad128 * 4 <= gridless_budget_bytes
    n_pad = n_pad128 if gridless else _round_up(n, tile_n)

    # ---- wrapper-side layout plumbing (single-pass glue, not compute) ----
    # x_aug^T: (F+1, Npad) = [x^T ; ones-row], zero-padded on the batch/lane axis.
    xt = jnp.concatenate([x.T, jnp.ones((1, n), jnp.float32)], axis=0)  # (F+1, N)
    if n_pad != n:
        xt = jnp.pad(xt, ((0, 0), (0, n_pad - n)))

    # W1_aug: (H+1, F+1); rows 0..H-1 = [W1^T | b1], row H = [0..0 | 1] so that
    # relu(W1_aug @ x_aug^T) carries a ones row for the second bias fold.
    w1_aug = jnp.concatenate(
        [jnp.concatenate([w1.T.astype(jnp.float32), b1[:, None].astype(jnp.float32)],
                         axis=1),
         jnp.concatenate([jnp.zeros((1, f), jnp.float32),
                          jnp.ones((1, 1), jnp.float32)], axis=1)],
        axis=0)

    # W2_aug: (O, H+1) = [W2^T | b2]
    w2_aug = jnp.concatenate(
        [w2.T.astype(jnp.float32), b2[:, None].astype(jnp.float32)], axis=1)

    if gridless:
        # Single step, everything whole-array-resident in VMEM: no pipelining,
        # no double buffers, minimal per-call overhead.
        yt = pl.pallas_call(
            _mlp_kernel,
            out_shape=jax.ShapeDtypeStruct((o, n_pad), jnp.float32),
            in_specs=[
                pl.BlockSpec(memory_space=pltpu.MemorySpace.VMEM),
                pl.BlockSpec(memory_space=pltpu.MemorySpace.VMEM),
                pl.BlockSpec(memory_space=pltpu.MemorySpace.VMEM),
            ],
            out_specs=pl.BlockSpec(memory_space=pltpu.MemorySpace.VMEM),
            compiler_params=pltpu.CompilerParams(
                vmem_limit_bytes=_GRIDLESS_VMEM_LIMIT),
        )(xt, w1_aug, w2_aug)
    else:
        # Truly huge batch: 1-D parallel grid over wide batch-lane tiles; weight
        # blocks map to (0,0) every step so W1_aug / W2_aug stay VMEM-resident, and
        # x / out tiles are auto-pipelined (double-buffered footprint ~1.3 MB at
        # tile_n=32768).  "parallel" lets multi-TC chips shard steps across cores.
        # TODO(synk): verify on v7x whether plain "parallel" shards across the 2 TCs
        # or CORE_PARALLEL is needed; only relevant at multi-million-row batches.
        yt = pl.pallas_call(
            _mlp_kernel,
            out_shape=jax.ShapeDtypeStruct((o, n_pad), jnp.float32),
            grid=(n_pad // tile_n,),
            in_specs=[
                pl.BlockSpec((f + 1, tile_n), lambda j: (0, j)),
                pl.BlockSpec((h + 1, f + 1), lambda j: (0, 0)),
                pl.BlockSpec((o, h + 1), lambda j: (0, 0)),
            ],
            out_specs=pl.BlockSpec((o, tile_n), lambda j: (0, j)),
            compiler_params=pltpu.CompilerParams(
                dimension_semantics=("parallel",)),
        )(xt, w1_aug, w2_aug)

    # Back to PyTorch layout (N, O); slicing off the lane padding.
    return yt[:, :n].T


def init_net_params(key, n_feature, n_hidden, n_output):
    """Deterministic init mimicking torch.nn.Linear defaults:
    U(-1/sqrt(fan_in), 1/sqrt(fan_in)) for both weight and bias.
    Weights are returned as (in, out) — i.e. PyTorch weight transposed."""
    k1, k2, k3, k4 = jax.random.split(key, 4)
    bound1 = 1.0 / jnp.sqrt(jnp.float32(n_feature))
    bound2 = 1.0 / jnp.sqrt(jnp.float32(n_hidden))
    w1 = jax.random.uniform(k1, (n_feature, n_hidden), jnp.float32, -bound1, bound1)
    b1 = jax.random.uniform(k2, (n_hidden,), jnp.float32, -bound1, bound1)
    w2 = jax.random.uniform(k3, (n_hidden, n_output), jnp.float32, -bound2, bound2)
    b2 = jax.random.uniform(k4, (n_output,), jnp.float32, -bound2, bound2)
    return w1, b1, w2, b2


if __name__ == "__main__":
    key = jax.random.PRNGKey(0)
    kx, kp = jax.random.split(key)

    # Mirror the reference script's data construction:
    #   x0 ~ N(+2, 1), x1 ~ N(-2, 1), concatenated along batch -> (200, 2)
    n_per_class, n_feature, n_hidden, n_output = 100, 2, 10, 2
    kx0, kx1 = jax.random.split(kx)
    x0 = 2.0 + jax.random.normal(kx0, (n_per_class, n_feature), jnp.float32)
    x1 = -2.0 + jax.random.normal(kx1, (n_per_class, n_feature), jnp.float32)
    x = jnp.concatenate([x0, x1], axis=0)  # (200, 2) float32

    w1, b1, w2, b2 = init_net_params(kp, n_feature, n_hidden, n_output)

    # Gridless (single-step, whole-array VMEM) path: N=200 -> padded to 256 lanes.
    out = jax.block_until_ready(net_forward(x, w1, b1, w2, b2))
    ref = jnp.maximum(x @ w1 + b1, 0.0) @ w2 + b2
    assert out.shape == (2 * n_per_class, n_output)
    assert jnp.allclose(out, ref, atol=1e-5, rtol=1e-5)

    # With the new VMEM-budget cutoff, N=1600 also takes the single-step path.
    xb = jnp.tile(x, (8, 1))  # (1600, 2)
    outb = jax.block_until_ready(net_forward(xb, w1, b1, w2, b2))
    refb = jnp.maximum(xb @ w1 + b1, 0.0) @ w2 + b2
    assert outb.shape == xb.shape[:1] + (n_output,)
    assert jnp.allclose(outb, refb, atol=1e-5, rtol=1e-5)

    # Exercise the gridded fallback path (force it with a zero budget and a small
    # tile so it runs multiple grid steps at a small shape): 1600 -> 4 x 512 lanes.
    outg = jax.block_until_ready(
        net_forward(xb, w1, b1, w2, b2, gridless_budget_bytes=0, tile_n=512))
    assert outg.shape == xb.shape[:1] + (n_output,)
    assert jnp.allclose(outg, refb, atol=1e-5, rtol=1e-5)

    print("KERNEL_OK")
</pallas_src>

<mosaic_0001>
module attributes {stable_mosaic.version = 11 : i64} {
  func.func @_mlp_kernel(%arg0: memref<3x256xf32, #tpu.memory_space<vmem>>, %arg1: memref<11x3xf32, #tpu.memory_space<vmem>>, %arg2: memref<2x11xf32, #tpu.memory_space<vmem>>, %arg3: memref<2x256xf32, #tpu.memory_space<vmem>>) attributes {dimension_semantics = [], scalar_prefetch = 0 : i64, scratch_operands = 0 : i64, tpu.core_type = #tpu.core_type<tc>} {
    %c0 = arith.constant 0 : index
    %c0_0 = arith.constant 0 : index
    %0 = vector.load %arg1[%c0, %c0_0] : memref<11x3xf32, #tpu.memory_space<vmem>>, vector<11x3xf32>
    %c0_1 = arith.constant 0 : index
    %c0_2 = arith.constant 0 : index
    %1 = vector.load %arg0[%c0_1, %c0_2] : memref<3x256xf32, #tpu.memory_space<vmem>>, vector<3x256xf32>
    %cst = arith.constant dense<0.000000e+00> : vector<11x256xf32>
    %2 = tpu.matmul %0, %1, %cst {dimension_numbers = #tpu.dot_dimension_numbers<[1], [0], [0], [1], [0, 0, 1, 1], [], []>} : vector<11x3xf32>, vector<3x256xf32>, vector<11x256xf32> -> vector<11x256xf32>
    %cst_3 = arith.constant 0.000000e+00 : f32
    %3 = vector.broadcast %cst_3 : f32 to vector<11x256xf32>
    %4 = arith.maximumf %2, %3 : vector<11x256xf32>
    %c0_4 = arith.constant 0 : index
    %c0_5 = arith.constant 0 : index
    %5 = vector.load %arg2[%c0_4, %c0_5] : memref<2x11xf32, #tpu.memory_space<vmem>>, vector<2x11xf32>
    %cst_6 = arith.constant dense<0.000000e+00> : vector<2x256xf32>
    %6 = tpu.matmul %5, %4, %cst_6 {dimension_numbers = #tpu.dot_dimension_numbers<[1], [0], [0], [1], [0, 0, 1, 1], [], []>} : vector<2x11xf32>, vector<11x256xf32>, vector<2x256xf32> -> vector<2x256xf32>
    %c0_7 = arith.constant 0 : index
    %c0_8 = arith.constant 0 : index
    %7 = vector.load %arg3[%c0_7, %c0_8] : memref<2x256xf32, #tpu.memory_space<vmem>>, vector<2x256xf32>
    tpu.vector_store %arg3[%c0_7, %c0_8], %6 {strides = array<i32>} : memref<2x256xf32, #tpu.memory_space<vmem>>, vector<2x256xf32>,
    return
  }
}

</mosaic_0001>

<llo_original>
// kernel: tpu_custom_call.1
$region0: #{tpu_custom_call.1}
  #allocation0 [shape = 'u32[]', space=smem, size = 0x4, offset = 0x4, fixed_abs, tag = 'smem constant byte address 0x4 - core index']
  #allocation1 [shape = 'u32[144,128]{1,0:T(1,128)}', space=vmem, size = 0x12000, scoped, tag = 'internal scratch']
  %s0 = inlined_call_operand.vmem [shape: f32[3,256], index: 0, kind: input, shape index: {}]
  %s1 = inlined_call_operand.vmem [shape: f32[11,3], index: 1, kind: input, shape index: {}]
  %s2 = inlined_call_operand.vmem [shape: f32[2,11], index: 2, kind: input, shape index: {}]
  %s3 = inlined_call_operand.hbm [shape: f32[2,256], index: 3, kind: output, shape index: {}]
  %s4 = sld [smem:[#allocation0]]
  $region22: #{tpu_custom_call.1} parent=0
    _
  %s6 = ssub.s32 1, %s4
  %s7 = scalar_select 0, %s6, %s4
  $region1: #{tpu_custom_call.1} parent=0
    #allocation2 [shape = 'u8[2048]{0}', space=vmem, size = 0x800, scoped, tag = 'output window, operand 0, single buffered']
    #allocation3 [shape = 's32[1]{0}', space=sflag, size = 0x4, scoped, tag = 'scoped memory for tpu_custom_call.1']
    %8 = vsyncpa [#allocation3], 0
    // Predicated region
    $region2: #{tpu_custom_call.1} parent=1 // pred_check
      _
    $region3: #{tpu_custom_call.1} parent=1 // pred_check_branch
      %10 = sbr.rel (0) target = $region5
    $region4: #{tpu_custom_call.1} parent=1 // pred_region
      _
    $region5: #{tpu_custom_call.1} parent=1 // pred_fallthru
      _
    // Predicated region
    $region6: #{tpu_custom_call.1} parent=1 // pred_check
      _
    $region7: #{tpu_custom_call.1} parent=1 // pred_check_branch
      %12 = sbr.rel (0) target = $region9
    $region8: #{tpu_custom_call.1} parent=1 // pred_region
      _
    $region9: #{tpu_custom_call.1} parent=1 // pred_fallthru
      _
    // Predicated region
    $region10: #{tpu_custom_call.1} parent=1 // pred_check
      _
    $region11: #{tpu_custom_call.1} parent=1 // pred_check_branch
      %14 = sbr.rel (0) target = $region13
    $region12: #{tpu_custom_call.1} parent=1 // pred_region
      _
    $region13: #{tpu_custom_call.1} parent=1 // pred_fallthru
      _
    %v15 = vld [vmem:[%s1] sm:$0xff]
    %v16 = vld [vmem:[%s1 + $0x8] sm:$0x7]
    %v17 = vld [vmem:[%s0] sm:$0x77]
    %v19 = vcombine.high %v17, %v17
    %vm20 = vcmask 23552
    %v22 = vsel %vm20, %v15, 0
    %v25 = vsel %vm20, %v16, 0
    %vm27 = vcmask 1042432
    %v28 = vsel %vm27, %v17, 0
    %v30 = vsel %vm27, %v19, 0
    %32 = vmatprep.subr.mxu0 %v30
    %33 = vmatpush1.msra.mxu0 %v28
    %34 = vmatprep.subr.mxu0 0.0
    %35 = vmatpush1.msra.mxu0 0.0
    %36 = vmatprep.subr.mxu0 0.0
    %37 = vmatpush1.msra.mxu0 0.0
    %38 = vmatprep.subr.mxu0 0.0
    %39 = vmatpush1.msra.mxu0 0.0
    %40 = vmatprep.subr.mxu0 0.0
    %41 = vmatpush1.msra.mxu0 0.0
    %42 = vmatprep.subr.mxu0 0.0
    %43 = vmatpush1.msra.mxu0 0.0
    %44 = vmatprep.subr.mxu0 0.0
    %45 = vmatpush1.msra.mxu0 0.0
    %46 = vmatprep.subr.mxu0 0.0
    %47 = vmatpush1.msra.mxu0 0.0
    %48 = vmatprep.subr.mxu0 0.0
    %49 = vmatpush1.msra.mxu0 0.0
    %50 = vmatprep.subr.mxu0 0.0
    %51 = vmatpush1.msra.mxu0 0.0
    %52 = vmatprep.subr.mxu0 0.0
    %53 = vmatpush1.msra.mxu0 0.0
    %54 = vmatprep.subr.mxu0 0.0
    %55 = vmatpush1.msra.mxu0 0.0
    %56 = vmatprep.subr.mxu0 0.0
    %57 = vmatpush1.msra.mxu0 0.0
    %58 = vmatprep.subr.mxu0 0.0
    %59 = vmatpush1.msra.mxu0 0.0
    %60 = vmatprep.subr.mxu0 0.0
    %61 = vmatpush1.msra.mxu0 0.0
    %62 = vmatprep.subr.mxu0 0.0
    %63 = vmatpush1.msra.mxu0 0.0
    %64 = vmatprep.subr.mxu0 0.0
    %65 = vmatpush1.msra.mxu0 0.0
    %66 = vmatprep.subr.mxu0 0.0
    %67 = vmatpush1.msra.mxu0 0.0
    %68 = vmatprep.subr.mxu0 0.0
    %69 = vmatpush1.msra.mxu0 0.0
    %70 = vmatprep.subr.mxu0 0.0
    %71 = vmatpush1.msra.mxu0 0.0
    %72 = vmatprep.subr.mxu0 0.0
    %73 = vmatpush1.msra.mxu0 0.0
    %74 = vmatprep.subr.mxu0 0.0
    %75 = vmatpush1.msra.mxu0 0.0
    %76 = vmatprep.subr.mxu0 0.0
    %77 = vmatpush1.msra.mxu0 0.0
    %78 = vmatprep.subr.mxu0 0.0
    %79 = vmatpush1.msra.mxu0 0.0
    %80 = vmatprep.subr.mxu0 0.0
    %81 = vmatpush1.msra.mxu0 0.0
    %82 = vmatprep.subr.mxu0 0.0
    %83 = vmatpush1.msra.mxu0 0.0
    %84 = vmatprep.subr.mxu0 0.0
    %85 = vmatpush1.msra.mxu0 0.0
    %86 = vmatprep.subr.mxu0 0.0
    %87 = vmatpush1.msra.mxu0 0.0
    %88 = vmatprep.subr.mxu0 0.0
    %89 = vmatpush1.msra.mxu0 0.0
    %90 = vmatprep.subr.mxu0 0.0
    %91 = vmatpush1.msra.mxu0 0.0
    %92 = vmatprep.subr.mxu0 0.0
    %93 = vmatpush1.msra.mxu0 0.0
    %94 = vmatprep.subr.mxu0 0.0
    %95 = vmatpush1.msra.mxu0 0.0
    %96 = vmatprep.mubr.f32.mxu0 0.0
    %97 = vmatmul.mubr.f32.gmra.mrb[0].mxu0 %v22
    %v98 = vpop.f32.mrb[0].mxu0
    %v99 = vadd.f32 0.0, %v98
    %v100 = vpop.f32.mrb[0].mxu0
    %v101 = vadd.f32 0.0, %v100
    %102 = vmatprep.mubr.f32.mxu0 0.0
    %103 = vmatmul.mubr.f32.gmra.mrb[0].mxu0 %v25
    %v104 = vpop.f32.mrb[0].mxu0
    %v105 = vadd.f32 0.0, %v104
    %v106 = vpop.f32.mrb[0].mxu0
    %v107 = vadd.f32 0.0, %v106
    %108 = vdwg.mxu0
    %v109 = vmax.f32 %v99, 0.0
    %v110 = vmax.f32 %v101, 0.0
    %v111 = vmax.f32 %v105, 0.0
    %v112 = vmax.f32 %v107, 0.0
    %v113 = vld [vmem:[%s2] sm:$0x3]
    %vm114 = vcmask 89088
    %v116 = vsel %vm114, %v113, 0
    %v119 = vsel %vm27, %v111, 0
    %v122 = vsel %vm27, %v112, 0
    %124 = vmatprep.subr.mxu0 %v110
    %125 = vmatpush1.msra.mxu0 %v109
    %126 = vmatprep.subr.mxu0 %v122
    %127 = vmatpush1.msra.mxu0 %v119
    %128 = vmatprep.subr.mxu0 0.0
    %129 = vmatpush1.msra.mxu0 0.0
    %130 = vmatprep.subr.mxu0 0.0
    %131 = vmatpush1.msra.mxu0 0.0
    %132 = vmatprep.subr.mxu0 0.0
    %133 = vmatpush1.msra.mxu0 0.0
    %134 = vmatprep.subr.mxu0 0.0
    %135 = vmatpush1.msra.mxu0 0.0
    %136 = vmatprep.subr.mxu0 0.0
    %137 = vmatpush1.msra.mxu0 0.0
    %138 = vmatprep.subr.mxu0 0.0
    %139 = vmatpush1.msra.mxu0 0.0
    %140 = vmatprep.subr.mxu0 0.0
    %141 = vmatpush1.msra.mxu0 0.0
    %142 = vmatprep.subr.mxu0 0.0
    %143 = vmatpush1.msra.mxu0 0.0
    %144 = vmatprep.subr.mxu0 0.0
    %145 = vmatpush1.msra.mxu0 0.0
    %146 = vmatprep.subr.mxu0 0.0
    %147 = vmatpush1.msra.mxu0 0.0
    %148 = vmatprep.subr.mxu0 0.0
    %149 = vmatpush1.msra.mxu0 0.0
    %150 = vmatprep.subr.mxu0 0.0
    %151 = vmatpush1.msra.mxu0 0.0
    %152 = vmatprep.subr.mxu0 0.0
    %153 = vmatpush1.msra.mxu0 0.0
    %154 = vmatprep.subr.mxu0 0.0
    %155 = vmatpush1.msra.mxu0 0.0
    %156 = vmatprep.subr.mxu0 0.0
    %157 = vmatpush1.msra.mxu0 0.0
    %158 = vmatprep.subr.mxu0 0.0
    %159 = vmatpush1.msra.mxu0 0.0
    %160 = vmatprep.subr.mxu0 0.0
    %161 = vmatpush1.msra.mxu0 0.0
    %162 = vmatprep.subr.mxu0 0.0
    %163 = vmatpush1.msra.mxu0 0.0
    %164 = vmatprep.subr.mxu0 0.0
    %165 = vmatpush1.msra.mxu0 0.0
    %166 = vmatprep.subr.mxu0 0.0
    %167 = vmatpush1.msra.mxu0 0.0
    %168 = vmatprep.subr.mxu0 0.0
    %169 = vmatpush1.msra.mxu0 0.0
    %170 = vmatprep.subr.mxu0 0.0
    %171 = vmatpush1.msra.mxu0 0.0
    %172 = vmatprep.subr.mxu0 0.0
    %173 = vmatpush1.msra.mxu0 0.0
    %174 = vmatprep.subr.mxu0 0.0
    %175 = vmatpush1.msra.mxu0 0.0
    %176 = vmatprep.subr.mxu0 0.0
    %177 = vmatpush1.msra.mxu0 0.0
    %178 = vmatprep.subr.mxu0 0.0
    %179 = vmatpush1.msra.mxu0 0.0
    %180 = vmatprep.subr.mxu0 0.0
    %181 = vmatpush1.msra.mxu0 0.0
    %182 = vmatprep.subr.mxu0 0.0
    %183 = vmatpush1.msra.mxu0 0.0
    %184 = vmatprep.subr.mxu0 0.0
    %185 = vmatpush1.msra.mxu0 0.0
    %186 = vmatprep.subr.mxu0 0.0
    %187 = vmatpush1.msra.mxu0 0.0
    %188 = vmatprep.mubr.f32.mxu0 0.0
    %189 = vmatmul.mubr.f32.gmra.mrb[0].mxu0 %v116
    %v190 = vpop.f32.mrb[0].mxu0
    %v191 = vadd.f32 0.0, %v190
    %v192 = vpop.f32.mrb[0].mxu0
    %v193 = vadd.f32 0.0, %v192
    %194 = vdwg.mxu0
    %v197 = vcombine.low %v191, %v193
    %v199 = vunpack.c.l.s4 1983009808
    %v200 = vunpack.c.0.s8 %v199
    %v201 = vlaneseq
    %v202 = vshrl.u32 %v201, 7
    %v203 = vsub.s32 %v200, %v202
    %v204 = vrot.slane %v197, %v203
    %206 = vst [vmem:[#allocation2] sm:$0xf] %v204
    // Predicated region
    $region14: #{tpu_custom_call.1} parent=1 // pred_check
      _
    $region15: #{tpu_custom_call.1} parent=1 // pred_check_branch
      %208 = sbr.rel (0) target = $region17
    $region16: #{tpu_custom_call.1} parent=1 // pred_region
      %s210 = ssub.s32 64, 64
      %211 = vsyncadd [#allocation3], %s210
      %s213 = sshll.u32 [#allocation2], 4
      %s214 = int_to_ptr.vmem [resolvable:$true] %s213
      %216 = dma.vmem_to_hbm [thread:$0]  %s214, 64, %s3, [#allocation3]
    $region17: #{tpu_custom_call.1} parent=1 // pred_fallthru
      _
    // Predicated region
    $region18: #{tpu_custom_call.1} parent=1 // pred_check
      _
    $region19: #{tpu_custom_call.1} parent=1 // pred_check_branch
      %218 = sbr.rel (0) target = $region21
    $region20: #{tpu_custom_call.1} parent=1 // pred_region
      %219 = dma.done [#allocation3], 64
    $region21: #{tpu_custom_call.1} parent=1 // pred_fallthru
      _
    %220 = vsyncpa [#allocation3], 1

</llo_original>
